<compile_context>
chip_gen: v7x
topology: tpu7x:2x2x1
jax: 0.10.0
libtpu: 0.0.40
codegen_flags: <defaults>
</compile_context>

<pallas_src>
import jax
import jax.numpy as jnp
from jax.experimental import pallas as pl
from jax.experimental.pallas import tpu as pltpu


# ---------------------------------------------------------------------------
# Fused Pallas kernel: MLP + K-step PPR propagation
# ---------------------------------------------------------------------------
def _make_fused_kernel(n_layers, k, alpha):
    """Ref order: x, (w_0, b_0), ..., (w_{L-1}, b_{L-1}), adj_hat, out.

    Weights are pre-transposed to [in, out] and zero-padded; adj_hat already has
    the symmetric normalization and the (1-alpha) factor folded in.
    """

    def kernel(*refs):
        x_ref = refs[0]
        adj_ref = refs[1 + 2 * n_layers]
        o_ref = refs[2 + 2 * n_layers]

        # ---- MLP (all layers but the last use ReLU) ----
        h = x_ref[...]                                    # bf16 activations
        h0 = None
        for li in range(n_layers):
            w_ref = refs[1 + 2 * li]
            b_ref = refs[2 + 2 * li]
            y = jnp.dot(h, w_ref[...], preferred_element_type=jnp.float32)
            y = y + b_ref[...]                            # f32 epilogue
            if li != n_layers - 1:
                h = jnp.maximum(y, 0.0).astype(jnp.bfloat16)
            else:
                h0 = y                                    # cached_h, f32

        # ---- K-step propagation:  h <- A_hat @ h + alpha*h0 ----
        ah0 = alpha * h0                                  # hoisted (loop-invariant)
        adj = adj_ref[...]                                # bf16 pre-normalized adjacency
        h = h0
        for _ in range(k):                                # static K -> fully unrolled
            h = jnp.dot(adj, h.astype(jnp.bfloat16),
                        preferred_element_type=jnp.float32) + ah0

        o_ref[...] = h.astype(o_ref.dtype)

    return kernel


# ---------------------------------------------------------------------------
# Wrapper
# ---------------------------------------------------------------------------
def _round_up(x, m):
    return (x + m - 1) // m * m


def appnp_forward(features, params, adj, norm, *, k, alpha):
    """features: [N, Fin]; params: list of (W [out,in], b [out]) (PyTorch layout);
    adj: [N, N] dense adjacency; norm: [N, 1] = deg^{-1/2}."""
    n, in_feats = features.shape
    n_classes = params[-1][0].shape[0]
    n_layers = len(params)

    LANE, SUB = 128, 8
    np_ = _round_up(n, SUB)

    dims = [in_feats] + [w.shape[0] for w, _ in params]
    pdims = [_round_up(d, LANE) for d in dims]

    # Lane-dense, zero-padded, bf16 operands.
    x_p = jnp.zeros((np_, pdims[0]), jnp.bfloat16).at[:n, :in_feats].set(
        features.astype(jnp.bfloat16))

    ops = [x_p]
    for li, (w, b) in enumerate(params):
        fin, fout = dims[li], dims[li + 1]
        pin, pout = pdims[li], pdims[li + 1]
        wt = jnp.zeros((pin, pout), jnp.bfloat16).at[:fin, :fout].set(
            w.T.astype(jnp.bfloat16))
        bp = jnp.zeros((1, pout), jnp.float32).at[0, :fout].set(b)
        ops += [wt, bp]

    # Pre-normalized adjacency with (1 - alpha) folded in.
    adj_hat = (1.0 - alpha) * (norm * adj * norm.T)
    adj_p = jnp.zeros((np_, np_), jnp.bfloat16).at[:n, :n].set(
        adj_hat.astype(jnp.bfloat16))
    ops.append(adj_p)

    pout_last = pdims[-1]
    kernel = _make_fused_kernel(n_layers, k, alpha)

    out = pl.pallas_call(
        kernel,
        out_shape=jax.ShapeDtypeStruct((np_, pout_last), jnp.float32),
        grid=(1,),
        in_specs=[pl.BlockSpec(op.shape, lambda i: (0, 0)) for op in ops],
        out_specs=pl.BlockSpec((np_, pout_last), lambda i: (0, 0)),
        compiler_params=pltpu.CompilerParams(
            dimension_semantics=("arbitrary",)),
    )(*ops)

    return out[:n, :n_classes]


# ---------------------------------------------------------------------------
# Pure-JAX f32 reference (original module semantics, dropout = 0.0)
# ---------------------------------------------------------------------------
def appnp_reference(features, params, adj, norm, *, k, alpha):
    h = features
    n_layers = len(params)
    for idx, (w, b) in enumerate(params):
        h = h @ w.T + b
        if idx != n_layers - 1:
            h = jnp.maximum(h, 0.0)
    h0 = h
    for _ in range(k):
        h = h * norm
        h = adj @ h
        h = h * norm
        h = h * (1.0 - alpha) + h0 * alpha
    return h


# ---------------------------------------------------------------------------
# Main
# ---------------------------------------------------------------------------
if __name__ == "__main__":
    key = jax.random.PRNGKey(0)

    # Small synthetic problem: N nodes, in_feats -> hiddens -> n_classes.
    N = 64
    in_feats = 32
    hiddens = [16]
    n_classes = 8
    alpha = 0.1
    K = 3
    # dropout = 0.0 -> dropout branches in the PyTorch forward are skipped.

    # Deterministic parameter init (PyTorch nn.Linear shapes: W [out, in], b [out]).
    dims = [in_feats] + hiddens + [n_classes]
    params = []
    for li in range(len(dims) - 1):
        key, kw, kb = jax.random.split(key, 3)
        fan_in, fan_out = dims[li], dims[li + 1]
        bound = 1.0 / jnp.sqrt(jnp.float32(fan_in))
        w = jax.random.uniform(kw, (fan_out, fan_in), jnp.float32, -bound, bound)
        b = jax.random.uniform(kb, (fan_out,), jnp.float32, -bound, bound)
        params.append((w, b))

    # Deterministic node features.
    key, kf = jax.random.split(key)
    features = jax.random.normal(kf, (N, in_feats), jnp.float32)

    # Deterministic synthetic graph: ring (both directions) + self loops,
    # dense adjacency; norm = deg^{-1/2} (DGL 'norm' ndata).
    idx = jnp.arange(N)
    adj = (
        jnp.zeros((N, N), jnp.float32)
        .at[idx, idx].set(1.0)
        .at[idx, (idx + 1) % N].set(1.0)
        .at[idx, (idx - 1) % N].set(1.0)
    )
    deg = adj.sum(axis=1, keepdims=True)           # [N, 1]
    norm = 1.0 / jnp.sqrt(deg)                     # [N, 1]

    out = appnp_forward(features, params, adj, norm, k=K, alpha=alpha)
    out = jax.block_until_ready(out)

    ref = appnp_reference(features, params, adj, norm, k=K, alpha=alpha)
    assert out.shape == (N, n_classes)
    # bf16 MXU inputs (f32 accumulation) -> ~1e-2 level deviation vs f32 reference.
    assert jnp.allclose(out, ref, atol=3e-2, rtol=3e-2), "mismatch vs reference"

    print("KERNEL_OK")
</pallas_src>

<mosaic_0001>
module attributes {stable_mosaic.version = 11 : i64} {
  func.func @kernel(%arg0: i32, %arg1: memref<64x128xbf16, #tpu.memory_space<vmem>>, %arg2: memref<128x128xbf16, #tpu.memory_space<vmem>>, %arg3: memref<1x128xf32, #tpu.memory_space<vmem>>, %arg4: memref<128x128xbf16, #tpu.memory_space<vmem>>, %arg5: memref<1x128xf32, #tpu.memory_space<vmem>>, %arg6: memref<64x64xbf16, #tpu.memory_space<vmem>>, %arg7: memref<64x128xf32, #tpu.memory_space<vmem>>) attributes {dimension_semantics = [#tpu.dimension_semantics<arbitrary>], iteration_bounds = array<i64: 1>, scalar_prefetch = 0 : i64, scratch_operands = 0 : i64, tpu.core_type = #tpu.core_type<tc>, window_params = [{pipeline_mode = #tpu.pipeline_mode<synchronous>, transform_indices = @transform_0, window_bounds = array<i64: 64, 128>}, {pipeline_mode = #tpu.pipeline_mode<synchronous>, transform_indices = @transform_1, window_bounds = array<i64: 128, 128>}, {pipeline_mode = #tpu.pipeline_mode<synchronous>, transform_indices = @transform_2, window_bounds = array<i64: 1, 128>}, {pipeline_mode = #tpu.pipeline_mode<synchronous>, transform_indices = @transform_3, window_bounds = array<i64: 128, 128>}, {pipeline_mode = #tpu.pipeline_mode<synchronous>, transform_indices = @transform_4, window_bounds = array<i64: 1, 128>}, {pipeline_mode = #tpu.pipeline_mode<synchronous>, transform_indices = @transform_5, window_bounds = array<i64: 64, 64>}, {pipeline_mode = #tpu.pipeline_mode<synchronous>, transform_indices = @transform_6, window_bounds = array<i64: 64, 128>}]} {
    %c0 = arith.constant 0 : index
    %c0_0 = arith.constant 0 : index
    %0 = vector.load %arg1[%c0, %c0_0] : memref<64x128xbf16, #tpu.memory_space<vmem>>, vector<64x128xbf16>
    %c0_1 = arith.constant 0 : index
    %c0_2 = arith.constant 0 : index
    %1 = vector.load %arg2[%c0_1, %c0_2] : memref<128x128xbf16, #tpu.memory_space<vmem>>, vector<128x128xbf16>
    %cst = arith.constant dense<0.000000e+00> : vector<64x128xf32>
    %2 = tpu.matmul %0, %1, %cst {dimension_numbers = #tpu.dot_dimension_numbers<[1], [0], [0], [1], [0, 0, 1, 1], [], []>} : vector<64x128xbf16>, vector<128x128xbf16>, vector<64x128xf32> -> vector<64x128xf32>
    %c0_3 = arith.constant 0 : index
    %c0_4 = arith.constant 0 : index
    %3 = vector.load %arg3[%c0_3, %c0_4] : memref<1x128xf32, #tpu.memory_space<vmem>>, vector<1x128xf32>
    %4 = vector.broadcast %3 : vector<1x128xf32> to vector<64x128xf32>
    %5 = arith.addf %2, %4 : vector<64x128xf32>
    %cst_5 = arith.constant 0.000000e+00 : f32
    %6 = vector.broadcast %cst_5 : f32 to vector<64x128xf32>
    %7 = arith.maximumf %5, %6 : vector<64x128xf32>
    %8 = arith.truncf %7 : vector<64x128xf32> to vector<64x128xbf16>
    %c0_6 = arith.constant 0 : index
    %c0_7 = arith.constant 0 : index
    %9 = vector.load %arg4[%c0_6, %c0_7] : memref<128x128xbf16, #tpu.memory_space<vmem>>, vector<128x128xbf16>
    %cst_8 = arith.constant dense<0.000000e+00> : vector<64x128xf32>
    %10 = tpu.matmul %8, %9, %cst_8 {dimension_numbers = #tpu.dot_dimension_numbers<[1], [0], [0], [1], [0, 0, 1, 1], [], []>} : vector<64x128xbf16>, vector<128x128xbf16>, vector<64x128xf32> -> vector<64x128xf32>
    %c0_9 = arith.constant 0 : index
    %c0_10 = arith.constant 0 : index
    %11 = vector.load %arg5[%c0_9, %c0_10] : memref<1x128xf32, #tpu.memory_space<vmem>>, vector<1x128xf32>
    %12 = vector.broadcast %11 : vector<1x128xf32> to vector<64x128xf32>
    %13 = arith.addf %10, %12 : vector<64x128xf32>
    %cst_11 = arith.constant 1.000000e-01 : f32
    %14 = vector.broadcast %cst_11 : f32 to vector<64x128xf32>
    %15 = arith.mulf %14, %13 : vector<64x128xf32>
    %c0_12 = arith.constant 0 : index
    %c0_13 = arith.constant 0 : index
    %16 = vector.load %arg6[%c0_12, %c0_13] : memref<64x64xbf16, #tpu.memory_space<vmem>>, vector<64x64xbf16>
    %17 = arith.truncf %13 : vector<64x128xf32> to vector<64x128xbf16>
    %cst_14 = arith.constant dense<0.000000e+00> : vector<64x128xf32>
    %18 = tpu.matmul %16, %17, %cst_14 {dimension_numbers = #tpu.dot_dimension_numbers<[1], [0], [0], [1], [0, 0, 1, 1], [], []>} : vector<64x64xbf16>, vector<64x128xbf16>, vector<64x128xf32> -> vector<64x128xf32>
    %19 = arith.addf %18, %15 : vector<64x128xf32>
    %20 = arith.truncf %19 : vector<64x128xf32> to vector<64x128xbf16>
    %cst_15 = arith.constant dense<0.000000e+00> : vector<64x128xf32>
    %21 = tpu.matmul %16, %20, %cst_15 {dimension_numbers = #tpu.dot_dimension_numbers<[1], [0], [0], [1], [0, 0, 1, 1], [], []>} : vector<64x64xbf16>, vector<64x128xbf16>, vector<64x128xf32> -> vector<64x128xf32>
    %22 = arith.addf %21, %15 : vector<64x128xf32>
    %23 = arith.truncf %22 : vector<64x128xf32> to vector<64x128xbf16>
    %cst_16 = arith.constant dense<0.000000e+00> : vector<64x128xf32>
    %24 = tpu.matmul %16, %23, %cst_16 {dimension_numbers = #tpu.dot_dimension_numbers<[1], [0], [0], [1], [0, 0, 1, 1], [], []>} : vector<64x64xbf16>, vector<64x128xbf16>, vector<64x128xf32> -> vector<64x128xf32>
    %25 = arith.addf %24, %15 : vector<64x128xf32>
    %c0_17 = arith.constant 0 : index
    %c0_18 = arith.constant 0 : index
    %26 = vector.load %arg7[%c0_17, %c0_18] : memref<64x128xf32, #tpu.memory_space<vmem>>, vector<64x128xf32>
    tpu.vector_store %arg7[%c0_17, %c0_18], %25 {strides = array<i32>} : memref<64x128xf32, #tpu.memory_space<vmem>>, vector<64x128xf32>,
    return
  }
  func.func @transform_0(%arg0: i32) -> (i32, i32) {
    %c0_i32 = arith.constant 0 : i32
    %c0_i32_0 = arith.constant 0 : i32
    %c0_i32_1 = arith.constant 0 : i32
    return %c0_i32, %c0_i32_0 : i32, i32
  }
  func.func @transform_1(%arg0: i32) -> (i32, i32) {
    %c0_i32 = arith.constant 0 : i32
    %c0_i32_0 = arith.constant 0 : i32
    %c0_i32_1 = arith.constant 0 : i32
    return %c0_i32, %c0_i32_0 : i32, i32
  }
  func.func @transform_2(%arg0: i32) -> (i32, i32) {
    %c0_i32 = arith.constant 0 : i32
    %c0_i32_0 = arith.constant 0 : i32
    %c0_i32_1 = arith.constant 0 : i32
    return %c0_i32, %c0_i32_0 : i32, i32
  }
  func.func @transform_3(%arg0: i32) -> (i32, i32) {
    %c0_i32 = arith.constant 0 : i32
    %c0_i32_0 = arith.constant 0 : i32
    %c0_i32_1 = arith.constant 0 : i32
    return %c0_i32, %c0_i32_0 : i32, i32
  }
  func.func @transform_4(%arg0: i32) -> (i32, i32) {
    %c0_i32 = arith.constant 0 : i32
    %c0_i32_0 = arith.constant 0 : i32
    %c0_i32_1 = arith.constant 0 : i32
    return %c0_i32, %c0_i32_0 : i32, i32
  }
  func.func @transform_5(%arg0: i32) -> (i32, i32) {
    %c0_i32 = arith.constant 0 : i32
    %c0_i32_0 = arith.constant 0 : i32
    %c0_i32_1 = arith.constant 0 : i32
    return %c0_i32, %c0_i32_0 : i32, i32
  }
  func.func @transform_6(%arg0: i32) -> (i32, i32) {
    %c0_i32 = arith.constant 0 : i32
    %c0_i32_0 = arith.constant 0 : i32
    %c0_i32_1 = arith.constant 0 : i32
    return %c0_i32, %c0_i32_0 : i32, i32
  }
}

</mosaic_0001>

<llo_original>
// kernel: tpu_custom_call.1
$region0: #{tpu_custom_call.1}
  #allocation0 [shape = 'u32[]', space=smem, size = 0x4, offset = 0x4, fixed_abs, tag = 'smem constant byte address 0x4 - core index']
  #allocation1 [shape = 'u32[144,128]{1,0:T(1,128)}', space=vmem, size = 0x12000, scoped, tag = 'internal scratch']
  %s0 = inlined_call_operand.hbm [shape: bf16[64,128], index: 0, kind: input, shape index: {}]
  %s1 = inlined_call_operand.hbm [shape: bf16[128,128], index: 1, kind: input, shape index: {}]
  %s2 = inlined_call_operand.vmem [shape: f32[1,128], index: 2, kind: input, shape index: {}]
  %s3 = inlined_call_operand.hbm [shape: bf16[128,128], index: 3, kind: input, shape index: {}]
  %s4 = inlined_call_operand.vmem [shape: f32[1,128], index: 4, kind: input, shape index: {}]
  %s5 = inlined_call_operand.hbm [shape: bf16[64,64], index: 5, kind: input, shape index: {}]
  %s6 = inlined_call_operand.hbm [shape: f32[64,128], index: 6, kind: output, shape index: {}]
  %s7 = sld [smem:[#allocation0]]
  $region50: #{tpu_custom_call.1} parent=0
    _
  %s9 = ssub.s32 1, %s7
  %s10 = scalar_select 0, %s9, %s7
  $region1: #{tpu_custom_call.1} parent=0
    #allocation2 [shape = 'u8[16384]{0}', space=vmem, size = 0x4000, scoped, tag = 'input window, operand 0, single buffered']
    #allocation3 [shape = 's32[1]{0}', space=sflag, size = 0x4, scoped, tag = 'scoped memory for tpu_custom_call.1']
    #allocation4 [shape = 's32[1]{0}', space=sflag, size = 0x4, scoped, tag = 'scoped memory for tpu_custom_call.1']
    #allocation5 [shape = 'u8[32768]{0}', space=vmem, size = 0x8000, scoped, tag = 'input window, operand 1, single buffered']
    #allocation6 [shape = 's32[1]{0}', space=sflag, size = 0x4, scoped, tag = 'scoped memory for tpu_custom_call.1']
    #allocation7 [shape = 'u8[32768]{0}', space=vmem, size = 0x8000, scoped, tag = 'input window, operand 3, single buffered']
    #allocation8 [shape = 'u8[16384]{0}', space=vmem, size = 0x4000, scoped, tag = 'input window, operand 5, single buffered']
    #allocation9 [shape = 's32[1]{0}', space=sflag, size = 0x4, scoped, tag = 'scoped memory for tpu_custom_call.1']
    #allocation10 [shape = 'u8[32768]{0}', space=vmem, size = 0x8000, scoped, tag = 'output window, operand 0, single buffered']
    %11 = vsyncpa [#allocation3], 0
    %12 = vsyncpa [#allocation6], 0
    %13 = vsyncpa [#allocation9], 0
    %14 = vsyncpa [#allocation4], 0
    // Predicated region
    $region2: #{tpu_custom_call.1} parent=1 // pred_check
      _
    $region3: #{tpu_custom_call.1} parent=1 // pred_check_branch
      %16 = sbr.rel (0) target = $region5
    $region4: #{tpu_custom_call.1} parent=1 // pred_region
      %s18 = ssub.s32 512, 512
      %19 = vsyncadd [#allocation3], %s18
      %s20 = sshll.u32 [#allocation2], 4
      %s21 = int_to_ptr.vmem [resolvable:$true] %s20
      %26 = dma.hbm_to_vmem [thread:$0]  %s0, 512, %s21, [#allocation3], 64, 64, 4
    $region5: #{tpu_custom_call.1} parent=1 // pred_fallthru
      _
    // Predicated region
    $region6: #{tpu_custom_call.1} parent=1 // pred_check
      _
    $region7: #{tpu_custom_call.1} parent=1 // pred_check_branch
      %28 = sbr.rel (0) target = $region9
    $region8: #{tpu_custom_call.1} parent=1 // pred_region
      %s30 = ssub.s32 1024, 1024
      %31 = vsyncadd [#allocation6], %s30
      %s32 = sshll.u32 [#allocation5], 4
      %s33 = int_to_ptr.vmem [resolvable:$true] %s32
      %38 = dma.hbm_to_vmem [thread:$0]  %s1, 1024, %s33, [#allocation6], 64, 64, 4
    $region9: #{tpu_custom_call.1} parent=1 // pred_fallthru
      _
    // Predicated region
    $region10: #{tpu_custom_call.1} parent=1 // pred_check
      _
    $region11: #{tpu_custom_call.1} parent=1 // pred_check_branch
      %40 = sbr.rel (0) target = $region13
    $region12: #{tpu_custom_call.1} parent=1 // pred_region
      _
    $region13: #{tpu_custom_call.1} parent=1 // pred_fallthru
      _
    // Predicated region
    $region14: #{tpu_custom_call.1} parent=1 // pred_check
      _
    $region15: #{tpu_custom_call.1} parent=1 // pred_check_branch
      %42 = sbr.rel (0) target = $region17
    $region16: #{tpu_custom_call.1} parent=1 // pred_region
      %s44 = ssub.s32 1024, 1024
      %45 = vsyncadd [#allocation6], %s44
      %s46 = sshll.u32 [#allocation7], 4
      %s47 = int_to_ptr.vmem [resolvable:$true] %s46
      %52 = dma.hbm_to_vmem [thread:$0]  %s3, 1024, %s47, [#allocation6], 64, 64, 4
    $region17: #{tpu_custom_call.1} parent=1 // pred_fallthru
      _
    // Predicated region
    $region18: #{tpu_custom_call.1} parent=1 // pred_check
      _
    $region19: #{tpu_custom_call.1} parent=1 // pred_check_branch
      %54 = sbr.rel (0) target = $region21
    $region20: #{tpu_custom_call.1} parent=1 // pred_region
      _
    $region21: #{tpu_custom_call.1} parent=1 // pred_fallthru
      _
    // Predicated region
    $region22: #{tpu_custom_call.1} parent=1 // pred_check
      _
    $region23: #{tpu_custom_call.1} parent=1 // pred_check_branch
      %56 = sbr.rel (0) target = $region25
    $region24: #{tpu_custom_call.1} parent=1 // pred_region
      %s58 = ssub.s32 512, 512
      %59 = vsyncadd [#allocation9], %s58
      %s60 = sshll.u32 [#allocation8], 4
      %s61 = int_to_ptr.vmem [resolvable:$true] %s60
      %66 = dma.hbm_to_vmem [thread:$0]  %s5, 512, %s61, [#allocation9], 64, 64, 4
    $region25: #{tpu_custom_call.1} parent=1 // pred_fallthru
      _
    // Predicated region
    $region26: #{tpu_custom_call.1} parent=1 // pred_check
      _
    $region27: #{tpu_custom_call.1} parent=1 // pred_check_branch
      %68 = sbr.rel (0) target = $region29
    $region28: #{tpu_custom_call.1} parent=1 // pred_region
      %69 = dma.done [#allocation3], 512
    $region29: #{tpu_custom_call.1} parent=1 // pred_fallthru
      _
    // Predicated region
    $region30: #{tpu_custom_call.1} parent=1 // pred_check
      _
    $region31: #{tpu_custom_call.1} parent=1 // pred_check_branch
      %71 = sbr.rel (0) target = $region33
    $region32: #{tpu_custom_call.1} parent=1 // pred_region
      %72 = dma.done [#allocation6], 1024
    $region33: #{tpu_custom_call.1} parent=1 // pred_fallthru
      _
    // Predicated region
    $region34: #{tpu_custom_call.1} parent=1 // pred_check
      _
    $region35: #{tpu_custom_call.1} parent=1 // pred_check_branch
      %74 = sbr.rel (0) target = $region37
    $region36: #{tpu_custom_call.1} parent=1 // pred_region
      %75 = dma.done [#allocation6], 1024
    $region37: #{tpu_custom_call.1} parent=1 // pred_fallthru
      _
    // Predicated region
    $region38: #{tpu_custom_call.1} parent=1 // pred_check
      _
    $region39: #{tpu_custom_call.1} parent=1 // pred_check_branch
      %77 = sbr.rel (0) target = $region41
    $region40: #{tpu_custom_call.1} parent=1 // pred_region
      %78 = dma.done [#allocation9], 512
    $region41: #{tpu_custom_call.1} parent=1 // pred_fallthru
      _
    %v80 = vld [vmem:[#allocation2] sm:$0xf]
    %v81 = vld [vmem:[#allocation2 + $0x4] sm:$0xf]
    %v82 = vld [vmem:[#allocation2 + $0x8] sm:$0xf]
    %v83 = vld [vmem:[#allocation2 + $0xc] sm:$0xf]
    %v84 = vld [vmem:[#allocation2 + $0x10] sm:$0xf]
    %v85 = vld [vmem:[#allocation2 + $0x14] sm:$0xf]
    %v86 = vld [vmem:[#allocation2 + $0x18] sm:$0xf]
    %v87 = vld [vmem:[#allocation2 + $0x1c] sm:$0xf]
    %v88 = vld [vmem:[#allocation5] sm:$0xf]
    %v89 = vld [vmem:[#allocation5 + $0x4] sm:$0xf]
    %v90 = vld [vmem:[#allocation5 + $0x8] sm:$0xf]
    %v91 = vld [vmem:[#allocation5 + $0xc] sm:$0xf]
    %v92 = vld [vmem:[#allocation5 + $0x10] sm:$0xf]
    %v93 = vld [vmem:[#allocation5 + $0x14] sm:$0xf]
    %v94 = vld [vmem:[#allocation5 + $0x18] sm:$0xf]
    %v95 = vld [vmem:[#allocation5 + $0x1c] sm:$0xf]
    %v96 = vld [vmem:[#allocation5 + $0x20] sm:$0xf]
    %v97 = vld [vmem:[#allocation5 + $0x24] sm:$0xf]
    %v98 = vld [vmem:[#allocation5 + $0x28] sm:$0xf]
    %v99 = vld [vmem:[#allocation5 + $0x2c] sm:$0xf]
    %v100 = vld [vmem:[#allocation5 + $0x30] sm:$0xf]
    %v101 = vld [vmem:[#allocation5 + $0x34] sm:$0xf]
    %v102 = vld [vmem:[#allocation5 + $0x38] sm:$0xf]
    %v103 = vld [vmem:[#allocation5 + $0x3c] sm:$0xf]
    %v104 = vld [vmem:[%s2] sm:$0x1]
    %v106 = vlaneseq
    %v107 = vshrl.u32 %v106, 7
    %v108 = vsub.s32 0, %v107
    %v109 = vrot.slane %v104, %v108
    %v119 = vunpack.c.l.b16 %v80
    %v120 = vunpack.c.l.b16 %v81
    %v121 = vunpack.c.l.b16 %v82
    %v122 = vunpack.c.l.b16 %v83
    %v123 = vunpack.c.l.b16 %v84
    %v124 = vunpack.c.l.b16 %v85
    %v125 = vunpack.c.l.b16 %v86
    %v126 = vunpack.c.l.b16 %v87
    %v127 = vpack.c.b16 %v120, %v119
    %v128 = vpack.c.b16 %v122, %v121
    %v129 = vpack.c.b16 %v124, %v123
    %v130 = vpack.c.b16 %v126, %v125
    %v151 = vunpack.c.l.b16 %v88
    %v152 = vunpack.c.l.b16 %v89
    %v153 = vunpack.c.l.b16 %v90
    %v154 = vunpack.c.l.b16 %v91
    %v155 = vunpack.c.l.b16 %v92
    %v156 = vunpack.c.l.b16 %v93
    %v157 = vunpack.c.l.b16 %v94
    %v158 = vunpack.c.l.b16 %v95
    %v159 = vunpack.c.l.b16 %v96
    %v160 = vunpack.c.l.b16 %v97
    %v161 = vunpack.c.l.b16 %v98
    %v162 = vunpack.c.l.b16 %v99
    %v163 = vunpack.c.l.b16 %v100
    %v164 = vunpack.c.l.b16 %v101
    %v165 = vunpack.c.l.b16 %v102
    %v166 = vunpack.c.l.b16 %v103
    %v167 = vpack.c.b16 %v152, %v151
    %v168 = vpack.c.b16 %v154, %v153
    %v169 = vpack.c.b16 %v156, %v155
    %v170 = vpack.c.b16 %v158, %v157
    %v171 = vpack.c.b16 %v160, %v159
    %v172 = vpack.c.b16 %v162, %v161
    %v173 = vpack.c.b16 %v164, %v163
    %v174 = vpack.c.b16 %v166, %v165
    %183 = vmatprep.subr.bf16.mxu0 0
    %184 = vmatpush1.bf16.msra.mxu0 %v167
    %185 = vmatprep.subr.bf16.mxu0 0
    %186 = vmatpush1.bf16.msra.mxu0 %v168
    %187 = vmatprep.subr.bf16.mxu0 0
    %188 = vmatpush1.bf16.msra.mxu0 %v169
    %189 = vmatprep.subr.bf16.mxu0 0
    %190 = vmatpush1.bf16.msra.mxu0 %v170
    %191 = vmatprep.subr.bf16.mxu0 0
    %192 = vmatpush1.bf16.msra.mxu0 %v171
    %193 = vmatprep.subr.bf16.mxu0 0
    %194 = vmatpush1.bf16.msra.mxu0 %v172
    %195 = vmatprep.subr.bf16.mxu0 0
    %196 = vmatpush1.bf16.msra.mxu0 %v173
    %197 = vmatprep.subr.bf16.mxu0 0
    %198 = vmatpush1.bf16.msra.mxu0 %v174
    %199 = vmatprep.subr.bf16.mxu0 0
    %200 = vmatpush1.bf16.msra.mxu0 0
    %201 = vmatprep.subr.bf16.mxu0 0
    %202 = vmatpush1.bf16.msra.mxu0 0
    %203 = vmatprep.subr.bf16.mxu0 0
    %204 = vmatpush1.bf16.msra.mxu0 0
    %205 = vmatprep.subr.bf16.mxu0 0
    %206 = vmatpush1.bf16.msra.mxu0 0
    %207 = vmatprep.subr.bf16.mxu0 0
    %208 = vmatpush1.bf16.msra.mxu0 0
    %209 = vmatprep.subr.bf16.mxu0 0
    %210 = vmatpush1.bf16.msra.mxu0 0
    %211 = vmatprep.subr.bf16.mxu0 0
    %212 = vmatpush1.bf16.msra.mxu0 0
    %213 = vmatprep.subr.bf16.mxu0 0
    %214 = vmatpush1.bf16.msra.mxu0 0
    %215 = vmatprep.mubr.bf16.mxu0 0
    %216 = vmatmul.mubr.bf16.gmra.mrb[0].mxu0 %v127
    %v217 = vpop.f32.mrb[0].mxu0
    %v218 = vadd.f32 %v109, %v217
    %v219 = vpop.f32.mrb[0].mxu0
    %v220 = vpop.f32.mrb[0].mxu0
    %v221 = vadd.f32 %v109, %v220
    %v222 = vpop.f32.mrb[0].mxu0
    %223 = vmatprep.mubr.bf16.mxu0 0
    %224 = vmatmul.mubr.bf16.gmra.mrb[0].mxu0 %v128
    %v225 = vpop.f32.mrb[0].mxu0
    %v226 = vadd.f32 %v109, %v225
    %v227 = vpop.f32.mrb[0].mxu0
    %v228 = vpop.f32.mrb[0].mxu0
    %v229 = vadd.f32 %v109, %v228
    %v230 = vpop.f32.mrb[0].mxu0
    %231 = vmatprep.mubr.bf16.mxu0 0
    %232 = vmatmul.mubr.bf16.gmra.mrb[0].mxu0 %v129
    %v233 = vpop.f32.mrb[0].mxu0
    %v234 = vadd.f32 %v109, %v233
    %v235 = vpop.f32.mrb[0].mxu0
    %v236 = vpop.f32.mrb[0].mxu0
    %v237 = vadd.f32 %v109, %v236
    %v238 = vpop.f32.mrb[0].mxu0
    %239 = vmatprep.mubr.bf16.mxu0 0
    %240 = vmatmul.mubr.bf16.gmra.mrb[0].mxu0 %v130
    %v241 = vpop.f32.mrb[0].mxu0
    %v242 = vadd.f32 %v109, %v241
    %v243 = vpop.f32.mrb[0].mxu0
    %v244 = vpop.f32.mrb[0].mxu0
    %v245 = vadd.f32 %v109, %v244
    %v246 = vpop.f32.mrb[0].mxu0
    %247 = vdwg.mxu0
    %v248 = vmax.f32 %v218, 0.0
    %v249 = vmax.f32 %v221, 0.0
    %v250 = vmax.f32 %v226, 0.0
    %v251 = vmax.f32 %v229, 0.0
    %v252 = vmax.f32 %v234, 0.0
    %v253 = vmax.f32 %v237, 0.0
    %v254 = vmax.f32 %v242, 0.0
    %v255 = vmax.f32 %v245, 0.0
    %v256 = vpack.c.bf16 %v249, %v248
    %v257 = vpack.c.bf16 %v251, %v250
    %v258 = vpack.c.bf16 %v253, %v252
    %v259 = vpack.c.bf16 %v255, %v254
    %v260 = vld [vmem:[#allocation7] sm:$0xf]
    %v261 = vld [vmem:[#allocation7 + $0x4] sm:$0xf]
    %v262 = vld [vmem:[#allocation7 + $0x8] sm:$0xf]
    %v263 = vld [vmem:[#allocation7 + $0xc] sm:$0xf]
    %v264 = vld [vmem:[#allocation7 + $0x10] sm:$0xf]
    %v265 = vld [vmem:[#allocation7 + $0x14] sm:$0xf]
    %v266 = vld [vmem:[#allocation7 + $0x18] sm:$0xf]
    %v267 = vld [vmem:[#allocation7 + $0x1c] sm:$0xf]
    %v268 = vld [vmem:[#allocation7 + $0x20] sm:$0xf]
    %v269 = vld [vmem:[#allocation7 + $0x24] sm:$0xf]
    %v270 = vld [vmem:[#allocation7 + $0x28] sm:$0xf]
    %v271 = vld [vmem:[#allocation7 + $0x2c] sm:$0xf]
    %v272 = vld [vmem:[#allocation7 + $0x30] sm:$0xf]
    %v273 = vld [vmem:[#allocation7 + $0x34] sm:$0xf]
    %v274 = vld [vmem:[#allocation7 + $0x38] sm:$0xf]
    %v275 = vld [vmem:[#allocation7 + $0x3c] sm:$0xf]
    %v276 = vld [vmem:[%s4] sm:$0x1]
    %v278 = vlaneseq
    %v279 = vshrl.u32 %v278, 7
    %v280 = vsub.s32 0, %v279
    %v281 = vrot.slane %v276, %v280
    %v299 = vunpack.c.l.b16 %v260
    %v300 = vunpack.c.l.b16 %v261
    %v301 = vunpack.c.l.b16 %v262
    %v302 = vunpack.c.l.b16 %v263
    %v303 = vunpack.c.l.b16 %v264
    %v304 = vunpack.c.l.b16 %v265
    %v305 = vunpack.c.l.b16 %v266
    %v306 = vunpack.c.l.b16 %v267
    %v307 = vunpack.c.l.b16 %v268
    %v308 = vunpack.c.l.b16 %v269
    %v309 = vunpack.c.l.b16 %v270
    %v310 = vunpack.c.l.b16 %v271
    %v311 = vunpack.c.l.b16 %v272
    %v312 = vunpack.c.l.b16 %v273
    %v313 = vunpack.c.l.b16 %v274
    %v314 = vunpack.c.l.b16 %v275
    %v315 = vpack.c.b16 %v300, %v299
    %v316 = vpack.c.b16 %v302, %v301
    %v317 = vpack.c.b16 %v304, %v303
    %v318 = vpack.c.b16 %v306, %v305
    %v319 = vpack.c.b16 %v308, %v307
    %v320 = vpack.c.b16 %v310, %v309
    %v321 = vpack.c.b16 %v312, %v311
    %v322 = vpack.c.b16 %v314, %v313
    %331 = vmatprep.subr.bf16.mxu0 0
    %332 = vmatpush1.bf16.msra.mxu0 %v315
    %333 = vmatprep.subr.bf16.mxu0 0
    %334 = vmatpush1.bf16.msra.mxu0 %v316
    %335 = vmatprep.subr.bf16.mxu0 0
    %336 = vmatpush1.bf16.msra.mxu0 %v317
    %337 = vmatprep.subr.bf16.mxu0 0
    %338 = vmatpush1.bf16.msra.mxu0 %v318
    %339 = vmatprep.subr.bf16.mxu0 0
    %340 = vmatpush1.bf16.msra.mxu0 %v319
    %341 = vmatprep.subr.bf16.mxu0 0
    %342 = vmatpush1.bf16.msra.mxu0 %v320
    %343 = vmatprep.subr.bf16.mxu0 0
    %344 = vmatpush1.bf16.msra.mxu0 %v321
    %345 = vmatprep.subr.bf16.mxu0 0
    %346 = vmatpush1.bf16.msra.mxu0 %v322
    %347 = vmatprep.subr.bf16.mxu0 0
    %348 = vmatpush1.bf16.msra.mxu0 0
    %349 = vmatprep.subr.bf16.mxu0 0
    %350 = vmatpush1.bf16.msra.mxu0 0
    %351 = vmatprep.subr.bf16.mxu0 0
    %352 = vmatpush1.bf16.msra.mxu0 0
    %353 = vmatprep.subr.bf16.mxu0 0
    %354 = vmatpush1.bf16.msra.mxu0 0
    %355 = vmatprep.subr.bf16.mxu0 0
    %356 = vmatpush1.bf16.msra.mxu0 0
    %357 = vmatprep.subr.bf16.mxu0 0
    %358 = vmatpush1.bf16.msra.mxu0 0
    %359 = vmatprep.subr.bf16.mxu0 0
    %360 = vmatpush1.bf16.msra.mxu0 0
    %361 = vmatprep.subr.bf16.mxu0 0
    %362 = vmatpush1.bf16.msra.mxu0 0
    %363 = vmatprep.mubr.bf16.mxu0 0
    %364 = vmatmul.mubr.bf16.gmra.mrb[0].mxu0 %v256
    %v365 = vpop.f32.mrb[0].mxu0
    %v366 = vadd.f32 %v281, %v365
    %v367 = vpop.f32.mrb[0].mxu0
    %v368 = vpop.f32.mrb[0].mxu0
    %v369 = vadd.f32 %v281, %v368
    %v370 = vpop.f32.mrb[0].mxu0
    %371 = vmatprep.mubr.bf16.mxu0 0
    %372 = vmatmul.mubr.bf16.gmra.mrb[0].mxu0 %v257
    %v373 = vpop.f32.mrb[0].mxu0
    %v374 = vadd.f32 %v281, %v373
    %v375 = vpop.f32.mrb[0].mxu0
    %v376 = vpop.f32.mrb[0].mxu0
    %v377 = vadd.f32 %v281, %v376
    %v378 = vpop.f32.mrb[0].mxu0
    %379 = vmatprep.mubr.bf16.mxu0 0
    %380 = vmatmul.mubr.bf16.gmra.mrb[0].mxu0 %v258
    %v381 = vpop.f32.mrb[0].mxu0
    %v382 = vadd.f32 %v281, %v381
    %v383 = vpop.f32.mrb[0].mxu0
    %v384 = vpop.f32.mrb[0].mxu0
    %v385 = vadd.f32 %v281, %v384
    %v386 = vpop.f32.mrb[0].mxu0
    %387 = vmatprep.mubr.bf16.mxu0 0
    %388 = vmatmul.mubr.bf16.gmra.mrb[0].mxu0 %v259
    %v389 = vpop.f32.mrb[0].mxu0
    %v390 = vadd.f32 %v281, %v389
    %v391 = vpop.f32.mrb[0].mxu0
    %v392 = vpop.f32.mrb[0].mxu0
    %v393 = vadd.f32 %v281, %v392
    %v394 = vpop.f32.mrb[0].mxu0
    %395 = vdwg.mxu0
    %v396 = vmul.f32 %v366, 0.1
    %v397 = vmul.f32 %v369, 0.1
    %v398 = vmul.f32 %v374, 0.1
    %v399 = vmul.f32 %v377, 0.1
    %v400 = vmul.f32 %v382, 0.1
    %v401 = vmul.f32 %v385, 0.1
    %v402 = vmul.f32 %v390, 0.1
    %v403 = vmul.f32 %v393, 0.1
    %v404 = vld [vmem:[#allocation8] sm:$0xf]
    %v405 = vld [vmem:[#allocation8 + $0x4] sm:$0xf]
    %v406 = vld [vmem:[#allocation8 + $0x8] sm:$0xf]
    %v407 = vld [vmem:[#allocation8 + $0xc] sm:$0xf]
    %v408 = vld [vmem:[#allocation8 + $0x10] sm:$0xf]
    %v409 = vld [vmem:[#allocation8 + $0x14] sm:$0xf]
    %v410 = vld [vmem:[#allocation8 + $0x18] sm:$0xf]
    %v411 = vld [vmem:[#allocation8 + $0x1c] sm:$0xf]
    %v412 = vpack.c.bf16 %v369, %v366
    %v413 = vpack.c.bf16 %v377, %v374
    %v414 = vpack.c.bf16 %v385, %v382
    %v415 = vpack.c.bf16 %v393, %v390
    %v424 = vunpack.c.l.b16 %v404
    %v425 = vunpack.c.l.b16 %v405
    %v426 = vunpack.c.l.b16 %v406
    %v427 = vunpack.c.l.b16 %v407
    %v428 = vunpack.c.l.b16 %v408
    %v429 = vunpack.c.l.b16 %v409
    %v430 = vunpack.c.l.b16 %v410
    %v431 = vunpack.c.l.b16 %v411
    %v432 = vpack.c.b16 %v425, %v424
    %v433 = vpack.c.b16 %v427, %v426
    %v434 = vpack.c.b16 %v429, %v428
    %v435 = vpack.c.b16 %v431, %v430
    %vm436 = vcmask 523264
    %v438 = vsel %vm436, %v432, 0
    %v441 = vsel %vm436, %v433, 0
    %v444 = vsel %vm436, %v434, 0
    %v447 = vsel %vm436, %v435, 0
    %449 = vmatprep.subr.bf16.mxu0 0
    %450 = vmatpush1.bf16.msra.mxu0 %v412
    %451 = vmatprep.subr.bf16.mxu0 0
    %452 = vmatpush1.bf16.msra.mxu0 %v413
    %453 = vmatprep.subr.bf16.mxu0 0
    %454 = vmatpush1.bf16.msra.mxu0 %v414
    %455 = vmatprep.subr.bf16.mxu0 0
    %456 = vmatpush1.bf16.msra.mxu0 %v415
    %457 = vmatprep.subr.bf16.mxu0 0
    %458 = vmatpush1.bf16.msra.mxu0 0
    %459 = vmatprep.subr.bf16.mxu0 0
    %460 = vmatpush1.bf16.msra.mxu0 0
    %461 = vmatprep.subr.bf16.mxu0 0
    %462 = vmatpush1.bf16.msra.mxu0 0
    %463 = vmatprep.subr.bf16.mxu0 0
    %464 = vmatpush1.bf16.msra.mxu0 0
    %465 = vmatprep.subr.bf16.mxu0 0
    %466 = vmatpush1.bf16.msra.mxu0 0
    %467 = vmatprep.subr.bf16.mxu0 0
    %468 = vmatpush1.bf16.msra.mxu0 0
    %469 = vmatprep.subr.bf16.mxu0 0
    %470 = vmatpush1.bf16.msra.mxu0 0
    %471 = vmatprep.subr.bf16.mxu0 0
    %472 = vmatpush1.bf16.msra.mxu0 0
    %473 = vmatprep.subr.bf16.mxu0 0
    %474 = vmatpush1.bf16.msra.mxu0 0
    %475 = vmatprep.subr.bf16.mxu0 0
    %476 = vmatpush1.bf16.msra.mxu0 0
    %477 = vmatprep.subr.bf16.mxu0 0
    %478 = vmatpush1.bf16.msra.mxu0 0
    %479 = vmatprep.subr.bf16.mxu0 0
    %480 = vmatpush1.bf16.msra.mxu0 0
    %481 = vmatprep.mubr.bf16.mxu0 0
    %482 = vmatmul.mubr.bf16.gmra.mrb[0].mxu0 %v438
    %v483 = vpop.f32.mrb[0].mxu0
    %v484 = vadd.f32 %v396, %v483
    %v485 = vpop.f32.mrb[0].mxu0
    %v486 = vpop.f32.mrb[0].mxu0
    %v487 = vadd.f32 %v397, %v486
    %v488 = vpop.f32.mrb[0].mxu0
    %489 = vmatprep.mubr.bf16.mxu0 0
    %490 = vmatmul.mubr.bf16.gmra.mrb[0].mxu0 %v441
    %v491 = vpop.f32.mrb[0].mxu0
    %v492 = vadd.f32 %v398, %v491
    %v493 = vpop.f32.mrb[0].mxu0
    %v494 = vpop.f32.mrb[0].mxu0
    %v495 = vadd.f32 %v399, %v494
    %v496 = vpop.f32.mrb[0].mxu0
    %497 = vmatprep.mubr.bf16.mxu0 0
    %498 = vmatmul.mubr.bf16.gmra.mrb[0].mxu0 %v444
    %v499 = vpop.f32.mrb[0].mxu0
    %v500 = vadd.f32 %v400, %v499
    %v501 = vpop.f32.mrb[0].mxu0
    %v502 = vpop.f32.mrb[0].mxu0
    %v503 = vadd.f32 %v401, %v502
    %v504 = vpop.f32.mrb[0].mxu0
    %505 = vmatprep.mubr.bf16.mxu0 0
    %506 = vmatmul.mubr.bf16.gmra.mrb[0].mxu0 %v447
    %v507 = vpop.f32.mrb[0].mxu0
    %v508 = vadd.f32 %v402, %v507
    %v509 = vpop.f32.mrb[0].mxu0
    %v510 = vpop.f32.mrb[0].mxu0
    %v511 = vadd.f32 %v403, %v510
    %v512 = vpop.f32.mrb[0].mxu0
    %513 = vdwg.mxu0
    %v514 = vpack.c.bf16 %v487, %v484
    %v515 = vpack.c.bf16 %v495, %v492
    %v516 = vpack.c.bf16 %v503, %v500
    %v517 = vpack.c.bf16 %v511, %v508
    %518 = vmatprep.subr.bf16.mxu0 0
    %519 = vmatpush1.bf16.msra.mxu0 %v514
    %520 = vmatprep.subr.bf16.mxu0 0
    %521 = vmatpush1.bf16.msra.mxu0 %v515
    %522 = vmatprep.subr.bf16.mxu0 0
    %523 = vmatpush1.bf16.msra.mxu0 %v516
    %524 = vmatprep.subr.bf16.mxu0 0
    %525 = vmatpush1.bf16.msra.mxu0 %v517
    %526 = vmatprep.subr.bf16.mxu0 0
    %527 = vmatpush1.bf16.msra.mxu0 0
    %528 = vmatprep.subr.bf16.mxu0 0
    %529 = vmatpush1.bf16.msra.mxu0 0
    %530 = vmatprep.subr.bf16.mxu0 0
    %531 = vmatpush1.bf16.msra.mxu0 0
    %532 = vmatprep.subr.bf16.mxu0 0
    %533 = vmatpush1.bf16.msra.mxu0 0
    %534 = vmatprep.subr.bf16.mxu0 0
    %535 = vmatpush1.bf16.msra.mxu0 0
    %536 = vmatprep.subr.bf16.mxu0 0
    %537 = vmatpush1.bf16.msra.mxu0 0
    %538 = vmatprep.subr.bf16.mxu0 0
    %539 = vmatpush1.bf16.msra.mxu0 0
    %540 = vmatprep.subr.bf16.mxu0 0
    %541 = vmatpush1.bf16.msra.mxu0 0
    %542 = vmatprep.subr.bf16.mxu0 0
    %543 = vmatpush1.bf16.msra.mxu0 0
    %544 = vmatprep.subr.bf16.mxu0 0
    %545 = vmatpush1.bf16.msra.mxu0 0
    %546 = vmatprep.subr.bf16.mxu0 0
    %547 = vmatpush1.bf16.msra.mxu0 0
    %548 = vmatprep.subr.bf16.mxu0 0
    %549 = vmatpush1.bf16.msra.mxu0 0
    %550 = vmatprep.mubr.bf16.mxu0 0
    %551 = vmatmul.mubr.bf16.gmra.mrb[0].mxu0 %v438
    %v552 = vpop.f32.mrb[0].mxu0
    %v553 = vadd.f32 %v396, %v552
    %v554 = vpop.f32.mrb[0].mxu0
    %v555 = vpop.f32.mrb[0].mxu0
    %v556 = vadd.f32 %v397, %v555
    %v557 = vpop.f32.mrb[0].mxu0
    %558 = vmatprep.mubr.bf16.mxu0 0
    %559 = vmatmul.mubr.bf16.gmra.mrb[0].mxu0 %v441
    %v560 = vpop.f32.mrb[0].mxu0
    %v561 = vadd.f32 %v398, %v560
    %v562 = vpop.f32.mrb[0].mxu0
    %v563 = vpop.f32.mrb[0].mxu0
    %v564 = vadd.f32 %v399, %v563
    %v565 = vpop.f32.mrb[0].mxu0
    %566 = vmatprep.mubr.bf16.mxu0 0
    %567 = vmatmul.mubr.bf16.gmra.mrb[0].mxu0 %v444
    %v568 = vpop.f32.mrb[0].mxu0
    %v569 = vadd.f32 %v400, %v568
    %v570 = vpop.f32.mrb[0].mxu0
    %v571 = vpop.f32.mrb[0].mxu0
    %v572 = vadd.f32 %v401, %v571
    %v573 = vpop.f32.mrb[0].mxu0
    %574 = vmatprep.mubr.bf16.mxu0 0
    %575 = vmatmul.mubr.bf16.gmra.mrb[0].mxu0 %v447
    %v576 = vpop.f32.mrb[0].mxu0
    %v577 = vadd.f32 %v402, %v576
    %v578 = vpop.f32.mrb[0].mxu0
    %v579 = vpop.f32.mrb[0].mxu0
    %v580 = vadd.f32 %v403, %v579
    %v581 = vpop.f32.mrb[0].mxu0
    %582 = vdwg.mxu0
    %v583 = vpack.c.bf16 %v556, %v553
    %v584 = vpack.c.bf16 %v564, %v561
    %v585 = vpack.c.bf16 %v572, %v569
    %v586 = vpack.c.bf16 %v580, %v577
    %587 = vmatprep.subr.bf16.mxu0 0
    %588 = vmatpush1.bf16.msra.mxu0 %v583
    %589 = vmatprep.subr.bf16.mxu0 0
    %590 = vmatpush1.bf16.msra.mxu0 %v584
    %591 = vmatprep.subr.bf16.mxu0 0
    %592 = vmatpush1.bf16.msra.mxu0 %v585
    %593 = vmatprep.subr.bf16.mxu0 0
    %594 = vmatpush1.bf16.msra.mxu0 %v586
    %595 = vmatprep.subr.bf16.mxu0 0
    %596 = vmatpush1.bf16.msra.mxu0 0
    %597 = vmatprep.subr.bf16.mxu0 0
    %598 = vmatpush1.bf16.msra.mxu0 0
    %599 = vmatprep.subr.bf16.mxu0 0
    %600 = vmatpush1.bf16.msra.mxu0 0
    %601 = vmatprep.subr.bf16.mxu0 0
    %602 = vmatpush1.bf16.msra.mxu0 0
    %603 = vmatprep.subr.bf16.mxu0 0
    %604 = vmatpush1.bf16.msra.mxu0 0
    %605 = vmatprep.subr.bf16.mxu0 0
    %606 = vmatpush1.bf16.msra.mxu0 0
    %607 = vmatprep.subr.bf16.mxu0 0
    %608 = vmatpush1.bf16.msra.mxu0 0
    %609 = vmatprep.subr.bf16.mxu0 0
    %610 = vmatpush1.bf16.msra.mxu0 0
    %611 = vmatprep.subr.bf16.mxu0 0
    %612 = vmatpush1.bf16.msra.mxu0 0
    %613 = vmatprep.subr.bf16.mxu0 0
    %614 = vmatpush1.bf16.msra.mxu0 0
    %615 = vmatprep.subr.bf16.mxu0 0
    %616 = vmatpush1.bf16.msra.mxu0 0
    %617 = vmatprep.subr.bf16.mxu0 0
    %618 = vmatpush1.bf16.msra.mxu0 0
    %619 = vmatprep.mubr.bf16.mxu0 0
    %620 = vmatmul.mubr.bf16.gmra.mrb[0].mxu0 %v438
    %v621 = vpop.f32.mrb[0].mxu0
    %v622 = vadd.f32 %v396, %v621
    %v623 = vpop.f32.mrb[0].mxu0
    %v624 = vpop.f32.mrb[0].mxu0
    %v625 = vadd.f32 %v397, %v624
    %v626 = vpop.f32.mrb[0].mxu0
    %627 = vmatprep.mubr.bf16.mxu0 0
    %628 = vmatmul.mubr.bf16.gmra.mrb[0].mxu0 %v441
    %v629 = vpop.f32.mrb[0].mxu0
    %v630 = vadd.f32 %v398, %v629
    %v631 = vpop.f32.mrb[0].mxu0
    %v632 = vpop.f32.mrb[0].mxu0
    %v633 = vadd.f32 %v399, %v632
    %v634 = vpop.f32.mrb[0].mxu0
    %635 = vmatprep.mubr.bf16.mxu0 0
    %636 = vmatmul.mubr.bf16.gmra.mrb[0].mxu0 %v444
    %v637 = vpop.f32.mrb[0].mxu0
    %v638 = vadd.f32 %v400, %v637
    %v639 = vpop.f32.mrb[0].mxu0
    %v640 = vpop.f32.mrb[0].mxu0
    %v641 = vadd.f32 %v401, %v640
    %v642 = vpop.f32.mrb[0].mxu0
    %643 = vmatprep.mubr.bf16.mxu0 0
    %644 = vmatmul.mubr.bf16.gmra.mrb[0].mxu0 %v447
    %v645 = vpop.f32.mrb[0].mxu0
    %v646 = vadd.f32 %v402, %v645
    %v647 = vpop.f32.mrb[0].mxu0
    %v648 = vpop.f32.mrb[0].mxu0
    %v649 = vadd.f32 %v403, %v648
    %v650 = vpop.f32.mrb[0].mxu0
    %651 = vdwg.mxu0
    %652 = vst [vmem:[#allocation10] sm:$0xff] %v622
    %653 = vst [vmem:[#allocation10 + $0x8] sm:$0xff] %v625
    %654 = vst [vmem:[#allocation10 + $0x10] sm:$0xff] %v630
    %655 = vst [vmem:[#allocation10 + $0x18] sm:$0xff] %v633
    %656 = vst [vmem:[#allocation10 + $0x20] sm:$0xff] %v638
    %657 = vst [vmem:[#allocation10 + $0x28] sm:$0xff] %v641
    %658 = vst [vmem:[#allocation10 + $0x30] sm:$0xff] %v646
    %659 = vst [vmem:[#allocation10 + $0x38] sm:$0xff] %v649
    // Predicated region
    $region42: #{tpu_custom_call.1} parent=1 // pred_check
      _
    $region43: #{tpu_custom_call.1} parent=1 // pred_check_branch
      %661 = sbr.rel (0) target = $region45
    $region44: #{tpu_custom_call.1} parent=1 // pred_region
      %s663 = ssub.s32 1024, 1024
      %664 = vsyncadd [#allocation4], %s663
      %s665 = sshll.u32 [#allocation10], 4
      %s666 = int_to_ptr.vmem [resolvable:$true] %s665
      %671 = dma.vmem_to_hbm [thread:$0]  %s666, 1024, %s6, [#allocation4], 128, 128, 8
    $region45: #{tpu_custom_call.1} parent=1 // pred_fallthru
      _
    // Predicated region
    $region46: #{tpu_custom_call.1} parent=1 // pred_check
      _
    $region47: #{tpu_custom_call.1} parent=1 // pred_check_branch
      %673 = sbr.rel (0) target = $region49
    $region48: #{tpu_custom_call.1} parent=1 // pred_region
      %674 = dma.done [#allocation4], 1024
    $region49: #{tpu_custom_call.1} parent=1 // pred_fallthru
      _
    %675 = vsyncpa [#allocation3], 1
    %676 = vsyncpa [#allocation6], 1
    %677 = vsyncpa [#allocation9], 1
    %678 = vsyncpa [#allocation4], 1

</llo_original>
